<compile_context>
chip_gen: v7x
topology: tpu7x:2x2x1
jax: 0.10.0
libtpu: 0.0.40
codegen_flags: <defaults>
</compile_context>

<pallas_src>
from functools import partial

import jax
import jax.numpy as jnp
from jax.experimental import pallas as pl
from jax.experimental.pallas import tpu as pltpu


def mlp_kernel(x_ref, w1_ref, b1_ref, w2_ref, b2_ref, o_ref):
    # fc1: (TB, D_in) @ (D_in, H_pad) -> f32 accumulate; bias + ReLU in f32.
    h = jnp.dot(x_ref[...], w1_ref[...], preferred_element_type=jnp.float32)
    h = jnp.maximum(h + b1_ref[...], 0.0)
    # fc2 against a lane-dense (H_pad, Dout_pad) weight, f32 accumulate.
    out = jnp.dot(h.astype(w2_ref.dtype), w2_ref[...],
                  preferred_element_type=jnp.float32)
    # Store only the real output columns (unpadded writeback, no post-slice).
    d_out = o_ref.shape[-1]
    o_ref[...] = (out[:, :d_out] + b2_ref[...]).astype(o_ref.dtype)


def _round_up(n, m):
    return ((n + m - 1) // m) * m


def _pick_batch_tile(b8, block_b):
    """Pick an 8-aligned batch tile.

    Prefers: (a) tiles large enough to amortize the ~0.35 us per-grid-step
    overhead, (b) >= 2 grid steps when the batch is big (v7x megacore), and
    (c) a tile that divides b8 exactly so no batch pad-copy is needed.
    """
    tb = min(block_b, b8)
    tb = max(8, (tb // 8) * 8)
    # v7x megacore: once each half still has >= 512 rows, force >= 2 steps.
    if b8 >= 1024 and 2 * tb > b8:
        tb = _round_up((b8 + 1) // 2, 8)
    if b8 % tb != 0:
        # Look for an 8-multiple divisor of b8 within [tb/2, tb] to avoid
        # padding the batch (extra HBM pass over x).
        for cand in range(tb, max(8, tb // 2) - 1, -8):
            if b8 % cand == 0:
                return cand
    return tb


@partial(jax.jit, static_argnames=("block_b", "mxu_dtype"))
def mlp_classifier_forward(x, w1, b1, w2, b2, *, block_b=2048,
                           mxu_dtype=jnp.bfloat16):
    """x: (B, D_in); w1: (H, D_in); b1: (H,); w2: (D_out, H); b2: (D_out,)
    (PyTorch nn.Linear convention).  Returns (B, D_out) in x.dtype."""
    B, d_in = x.shape
    h_dim = w1.shape[0]
    d_out = w2.shape[0]

    # Lane-pad hidden and (MXU-side) output feature dims to multiples of 128.
    h_pad = _round_up(h_dim, 128)
    dout_pad = _round_up(d_out, 128)

    # MXU operands in mxu_dtype (bf16 by default); biases stay f32 so the
    # bias-add/ReLU epilogue is exact f32 on every generation (incl. v5e).
    w1_t = jnp.zeros((d_in, h_pad), mxu_dtype).at[:, :h_dim].set(
        w1.T.astype(mxu_dtype))                                    # (D_in, H_pad)
    w2_t = jnp.zeros((h_pad, dout_pad), mxu_dtype).at[:h_dim, :d_out].set(
        w2.T.astype(mxu_dtype))                                    # (H_pad, Dout_pad)
    b1_p = jnp.zeros((1, h_pad), jnp.float32).at[:, :h_dim].set(
        b1.astype(jnp.float32))                                    # (1, H_pad)
    b2_p = b2.astype(jnp.float32).reshape(1, d_out)                # (1, D_out)

    # Batch tiling: 8-aligned tile, grid over rows, weights broadcast.
    b8 = _round_up(B, 8)
    tb = _pick_batch_tile(b8, block_b)
    b_pad = _round_up(b8, tb)
    x_mx = x.astype(mxu_dtype)
    x_in = x_mx if b_pad == B else (
        jnp.zeros((b_pad, d_in), mxu_dtype).at[:B].set(x_mx))
    grid = (b_pad // tb,)

    mxu_bytes = jnp.dtype(mxu_dtype).itemsize
    out_bytes = jnp.dtype(x.dtype).itemsize
    flops = 2 * b_pad * (d_in * h_pad + h_pad * dout_pad)
    bytes_accessed = (mxu_bytes * (x_in.size + w1_t.size + w2_t.size)
                      + 4 * (b1_p.size + b2_p.size)
                      + out_bytes * b_pad * d_out)
    cost = pl.CostEstimate(flops=flops, transcendentals=0,
                           bytes_accessed=bytes_accessed)

    out = pl.pallas_call(
        mlp_kernel,
        out_shape=jax.ShapeDtypeStruct((b_pad, d_out), x.dtype),
        grid=grid,
        in_specs=[
            pl.BlockSpec((tb, d_in), lambda i: (i, 0)),         # x: streamed
            pl.BlockSpec((d_in, h_pad), lambda i: (0, 0)),      # w1_t: resident
            pl.BlockSpec((1, h_pad), lambda i: (0, 0)),         # b1: resident
            pl.BlockSpec((h_pad, dout_pad), lambda i: (0, 0)),  # w2_t: resident
            pl.BlockSpec((1, d_out), lambda i: (0, 0)),         # b2: resident
        ],
        out_specs=pl.BlockSpec((tb, d_out), lambda i: (i, 0)),  # unpadded cols
        compiler_params=pltpu.CompilerParams(
            dimension_semantics=("parallel",)),
        cost_estimate=cost,
    )(x_in, w1_t, b1_p, w2_t, b2_p)

    # Strip batch padding only (column padding never leaves the kernel).
    return out if b_pad == B else out[:B]


def _ref_forward(x, w1, b1, w2, b2):
    h = jnp.maximum(x @ w1.T + b1, 0.0)
    return h @ w2.T + b2


if __name__ == "__main__":
    # Small shapes implied by the module: input_dim=32, hidden_dim=64, output_dim=10.
    B, D_IN, H, D_OUT = 8, 32, 64, 10

    key = jax.random.PRNGKey(0)
    kx, kw1, kb1, kw2, kb2 = jax.random.split(key, 5)

    x = jax.random.normal(kx, (B, D_IN), dtype=jnp.float32)

    # Deterministic parameter init (uniform, PyTorch-Linear-like bounds).
    bound1 = 1.0 / (D_IN ** 0.5)
    bound2 = 1.0 / (H ** 0.5)
    w1 = jax.random.uniform(kw1, (H, D_IN), minval=-bound1, maxval=bound1,
                            dtype=jnp.float32)
    b1 = jax.random.uniform(kb1, (H,), minval=-bound1, maxval=bound1,
                            dtype=jnp.float32)
    w2 = jax.random.uniform(kw2, (D_OUT, H), minval=-bound2, maxval=bound2,
                            dtype=jnp.float32)
    b2 = jax.random.uniform(kb2, (D_OUT,), minval=-bound2, maxval=bound2,
                            dtype=jnp.float32)

    ref = _ref_forward(x, w1, b1, w2, b2)

    # Default path: bf16 MXU operands, f32 accumulation/epilogue.
    out = mlp_classifier_forward(x, w1, b1, w2, b2)
    out = jax.block_until_ready(out)
    assert out.shape == (B, D_OUT)
    assert jnp.allclose(out, ref, atol=3e-2, rtol=3e-2)

    # f32-operand path: exact parity with the PyTorch f32 reference.
    out32 = mlp_classifier_forward(x, w1, b1, w2, b2, mxu_dtype=jnp.float32)
    out32 = jax.block_until_ready(out32)
    assert jnp.allclose(out32, ref, atol=1e-5, rtol=1e-5)

    print("KERNEL_OK")
</pallas_src>

<mosaic_0001>
module attributes {stable_mosaic.version = 11 : i64} {
  func.func @mlp_kernel(%arg0: i32, %arg1: memref<8x32xbf16, #tpu.memory_space<vmem>>, %arg2: memref<32x128xbf16, #tpu.memory_space<vmem>>, %arg3: memref<1x128xf32, #tpu.memory_space<vmem>>, %arg4: memref<128x128xbf16, #tpu.memory_space<vmem>>, %arg5: memref<1x10xf32, #tpu.memory_space<vmem>>, %arg6: memref<8x10xf32, #tpu.memory_space<vmem>>) attributes {dimension_semantics = [#tpu.dimension_semantics<parallel>], iteration_bounds = array<i64: 1>, scalar_prefetch = 0 : i64, scratch_operands = 0 : i64, tpu.core_type = #tpu.core_type<tc>, window_params = [{transform_indices = @transform_0, window_bounds = array<i64: 8, 32>}, {pipeline_mode = #tpu.pipeline_mode<synchronous>, transform_indices = @transform_1, window_bounds = array<i64: 32, 128>}, {pipeline_mode = #tpu.pipeline_mode<synchronous>, transform_indices = @transform_2, window_bounds = array<i64: 1, 128>}, {pipeline_mode = #tpu.pipeline_mode<synchronous>, transform_indices = @transform_3, window_bounds = array<i64: 128, 128>}, {pipeline_mode = #tpu.pipeline_mode<synchronous>, transform_indices = @transform_4, window_bounds = array<i64: 1, 10>}, {transform_indices = @transform_5, window_bounds = array<i64: 8, 10>}]} {
    %c0 = arith.constant 0 : index
    %c0_0 = arith.constant 0 : index
    %0 = vector.load %arg1[%c0, %c0_0] : memref<8x32xbf16, #tpu.memory_space<vmem>>, vector<8x32xbf16>
    %c0_1 = arith.constant 0 : index
    %c0_2 = arith.constant 0 : index
    %1 = vector.load %arg2[%c0_1, %c0_2] : memref<32x128xbf16, #tpu.memory_space<vmem>>, vector<32x128xbf16>
    %cst = arith.constant dense<0.000000e+00> : vector<8x128xf32>
    %2 = tpu.matmul %0, %1, %cst {dimension_numbers = #tpu.dot_dimension_numbers<[1], [0], [0], [1], [0, 0, 1, 1], [], []>} : vector<8x32xbf16>, vector<32x128xbf16>, vector<8x128xf32> -> vector<8x128xf32>
    %c0_3 = arith.constant 0 : index
    %c0_4 = arith.constant 0 : index
    %3 = vector.load %arg3[%c0_3, %c0_4] : memref<1x128xf32, #tpu.memory_space<vmem>>, vector<1x128xf32>
    %4 = vector.broadcast %3 : vector<1x128xf32> to vector<8x128xf32>
    %5 = arith.addf %2, %4 : vector<8x128xf32>
    %cst_5 = arith.constant 0.000000e+00 : f32
    %6 = vector.broadcast %cst_5 : f32 to vector<8x128xf32>
    %7 = arith.maximumf %5, %6 : vector<8x128xf32>
    %8 = arith.truncf %7 : vector<8x128xf32> to vector<8x128xbf16>
    %c0_6 = arith.constant 0 : index
    %c0_7 = arith.constant 0 : index
    %9 = vector.load %arg4[%c0_6, %c0_7] : memref<128x128xbf16, #tpu.memory_space<vmem>>, vector<128x128xbf16>
    %cst_8 = arith.constant dense<0.000000e+00> : vector<8x128xf32>
    %10 = tpu.matmul %8, %9, %cst_8 {dimension_numbers = #tpu.dot_dimension_numbers<[1], [0], [0], [1], [0, 0, 1, 1], [], []>} : vector<8x128xbf16>, vector<128x128xbf16>, vector<8x128xf32> -> vector<8x128xf32>
    %11 = vector.extract_strided_slice %10 {offsets = [0, 0], sizes = [8, 10], strides = [1, 1]} : vector<8x128xf32> to vector<8x10xf32>
    %c0_9 = arith.constant 0 : index
    %c0_10 = arith.constant 0 : index
    %12 = vector.load %arg5[%c0_9, %c0_10] : memref<1x10xf32, #tpu.memory_space<vmem>>, vector<1x10xf32>
    %13 = vector.broadcast %12 : vector<1x10xf32> to vector<8x10xf32>
    %14 = arith.addf %11, %13 : vector<8x10xf32>
    %c0_11 = arith.constant 0 : index
    %c0_12 = arith.constant 0 : index
    %15 = vector.load %arg6[%c0_11, %c0_12] : memref<8x10xf32, #tpu.memory_space<vmem>>, vector<8x10xf32>
    tpu.vector_store %arg6[%c0_11, %c0_12], %14 {strides = array<i32>} : memref<8x10xf32, #tpu.memory_space<vmem>>, vector<8x10xf32>,
    return
  }
  func.func @transform_0(%arg0: i32) -> (i32, i32) {
    %c0_i32 = arith.constant 0 : i32
    %c0_i32_0 = arith.constant 0 : i32
    return %arg0, %c0_i32 : i32, i32
  }
  func.func @transform_1(%arg0: i32) -> (i32, i32) {
    %c0_i32 = arith.constant 0 : i32
    %c0_i32_0 = arith.constant 0 : i32
    %c0_i32_1 = arith.constant 0 : i32
    return %c0_i32, %c0_i32_0 : i32, i32
  }
  func.func @transform_2(%arg0: i32) -> (i32, i32) {
    %c0_i32 = arith.constant 0 : i32
    %c0_i32_0 = arith.constant 0 : i32
    %c0_i32_1 = arith.constant 0 : i32
    return %c0_i32, %c0_i32_0 : i32, i32
  }
  func.func @transform_3(%arg0: i32) -> (i32, i32) {
    %c0_i32 = arith.constant 0 : i32
    %c0_i32_0 = arith.constant 0 : i32
    %c0_i32_1 = arith.constant 0 : i32
    return %c0_i32, %c0_i32_0 : i32, i32
  }
  func.func @transform_4(%arg0: i32) -> (i32, i32) {
    %c0_i32 = arith.constant 0 : i32
    %c0_i32_0 = arith.constant 0 : i32
    %c0_i32_1 = arith.constant 0 : i32
    return %c0_i32, %c0_i32_0 : i32, i32
  }
  func.func @transform_5(%arg0: i32) -> (i32, i32) {
    %c0_i32 = arith.constant 0 : i32
    %c0_i32_0 = arith.constant 0 : i32
    return %arg0, %c0_i32 : i32, i32
  }
}

</mosaic_0001>

<llo_original>
// kernel: mlp_classifier_forward.1
$region0: #{mlp_classifier_forward.1}
  #allocation0 [shape = 'u32[]', space=smem, size = 0x4, offset = 0x4, fixed_abs, tag = 'smem constant byte address 0x4 - core index']
  #allocation1 [shape = 'u32[144,128]{1,0:T(1,128)}', space=vmem, size = 0x12000, scoped, tag = 'internal scratch']
  %s0 = inlined_call_operand.vmem [shape: bf16[8,32], index: 0, kind: input, shape index: {}]
  %s1 = inlined_call_operand.vmem [shape: bf16[32,128], index: 1, kind: input, shape index: {}]
  %s2 = inlined_call_operand.vmem [shape: f32[1,128], index: 2, kind: input, shape index: {}]
  %s3 = inlined_call_operand.vmem [shape: bf16[128,128], index: 3, kind: input, shape index: {}]
  %s4 = inlined_call_operand.vmem [shape: f32[1,10], index: 4, kind: input, shape index: {}]
  %s5 = inlined_call_operand.hbm [shape: f32[8,10], index: 5, kind: output, shape index: {}]
  %s6 = sld [smem:[#allocation0]]
  $region30: #{mlp_classifier_forward.1} parent=0
    _
  %s8 = ssub.s32 1, %s6
  %s9 = scalar_select 0, %s8, %s6
  $region1: #{mlp_classifier_forward.1} parent=0
    #allocation2 [shape = 'u8[4096]{0}', space=vmem, size = 0x1000, scoped, tag = 'output window, operand 0, single buffered']
    #allocation3 [shape = 's32[1]{0}', space=sflag, size = 0x4, scoped, tag = 'scoped memory for mlp_classifier_forward.1']
    %10 = vsyncpa [#allocation3], 0
    // Predicated region
    $region2: #{mlp_classifier_forward.1} parent=1 // pred_check
      _
    $region3: #{mlp_classifier_forward.1} parent=1 // pred_check_branch
      %12 = sbr.rel (0) target = $region5
    $region4: #{mlp_classifier_forward.1} parent=1 // pred_region
      _
    $region5: #{mlp_classifier_forward.1} parent=1 // pred_fallthru
      _
    // Predicated region
    $region6: #{mlp_classifier_forward.1} parent=1 // pred_check
      _
    $region7: #{mlp_classifier_forward.1} parent=1 // pred_check_branch
      %14 = sbr.rel (0) target = $region9
    $region8: #{mlp_classifier_forward.1} parent=1 // pred_region
      _
    $region9: #{mlp_classifier_forward.1} parent=1 // pred_fallthru
      _
    // Predicated region
    $region10: #{mlp_classifier_forward.1} parent=1 // pred_check
      _
    $region11: #{mlp_classifier_forward.1} parent=1 // pred_check_branch
      %16 = sbr.rel (0) target = $region13
    $region12: #{mlp_classifier_forward.1} parent=1 // pred_region
      _
    $region13: #{mlp_classifier_forward.1} parent=1 // pred_fallthru
      _
    // Predicated region
    $region14: #{mlp_classifier_forward.1} parent=1 // pred_check
      _
    $region15: #{mlp_classifier_forward.1} parent=1 // pred_check_branch
      %18 = sbr.rel (0) target = $region17
    $region16: #{mlp_classifier_forward.1} parent=1 // pred_region
      _
    $region17: #{mlp_classifier_forward.1} parent=1 // pred_fallthru
      _
    // Predicated region
    $region18: #{mlp_classifier_forward.1} parent=1 // pred_check
      _
    $region19: #{mlp_classifier_forward.1} parent=1 // pred_check_branch
      %20 = sbr.rel (0) target = $region21
    $region20: #{mlp_classifier_forward.1} parent=1 // pred_region
      _
    $region21: #{mlp_classifier_forward.1} parent=1 // pred_fallthru
      _
    %v22 = vld [vmem:[%s0] sm:$0xf]
    %v23 = vld [vmem:[%s1] sm:$0xf]
    %v24 = vld [vmem:[%s1 + $0x4] sm:$0xf]
    %v25 = vld [vmem:[%s1 + $0x8] sm:$0xf]
    %v26 = vld [vmem:[%s1 + $0xc] sm:$0xf]
    %v27 = vld [vmem:[%s2] sm:$0x1]
    %v29 = vlaneseq
    %v30 = vshrl.u32 %v29, 7
    %v31 = vsub.s32 0, %v30
    %v32 = vrot.slane %v27, %v31
    %v38 = vunpack.c.l.b16 %v23
    %v39 = vunpack.c.l.b16 %v24
    %v40 = vunpack.c.l.b16 %v25
    %v41 = vunpack.c.l.b16 %v26
    %v42 = vpack.c.b16 %v39, %v38
    %v43 = vpack.c.b16 %v41, %v40
    %vm46 = vcmask 261120
    %v48 = vsel %vm46, %v22, 0
    %50 = vmatprep.subr.bf16.mxu0 0
    %51 = vmatpush1.bf16.msra.mxu0 %v42
    %52 = vmatprep.subr.bf16.mxu0 0
    %53 = vmatpush1.bf16.msra.mxu0 %v43
    %54 = vmatprep.subr.bf16.mxu0 0
    %55 = vmatpush1.bf16.msra.mxu0 0
    %56 = vmatprep.subr.bf16.mxu0 0
    %57 = vmatpush1.bf16.msra.mxu0 0
    %58 = vmatprep.subr.bf16.mxu0 0
    %59 = vmatpush1.bf16.msra.mxu0 0
    %60 = vmatprep.subr.bf16.mxu0 0
    %61 = vmatpush1.bf16.msra.mxu0 0
    %62 = vmatprep.subr.bf16.mxu0 0
    %63 = vmatpush1.bf16.msra.mxu0 0
    %64 = vmatprep.subr.bf16.mxu0 0
    %65 = vmatpush1.bf16.msra.mxu0 0
    %66 = vmatprep.subr.bf16.mxu0 0
    %67 = vmatpush1.bf16.msra.mxu0 0
    %68 = vmatprep.subr.bf16.mxu0 0
    %69 = vmatpush1.bf16.msra.mxu0 0
    %70 = vmatprep.subr.bf16.mxu0 0
    %71 = vmatpush1.bf16.msra.mxu0 0
    %72 = vmatprep.subr.bf16.mxu0 0
    %73 = vmatpush1.bf16.msra.mxu0 0
    %74 = vmatprep.subr.bf16.mxu0 0
    %75 = vmatpush1.bf16.msra.mxu0 0
    %76 = vmatprep.subr.bf16.mxu0 0
    %77 = vmatpush1.bf16.msra.mxu0 0
    %78 = vmatprep.subr.bf16.mxu0 0
    %79 = vmatpush1.bf16.msra.mxu0 0
    %80 = vmatprep.subr.bf16.mxu0 0
    %81 = vmatpush1.bf16.msra.mxu0 0
    %82 = vmatprep.mubr.bf16.mxu0 0
    %83 = vmatmul.mubr.bf16.gmra.mrb[0].mxu0 %v48
    %v84 = vpop.f32.mrb[0].mxu0
    %v85 = vadd.f32 %v32, %v84
    %v86 = vpop.f32.mrb[0].mxu0
    %v87 = vpop.f32.mrb[0].mxu0
    %v88 = vpop.f32.mrb[0].mxu0
    %89 = vdwg.mxu0
    %v90 = vmax.f32 %v85, 0.0
    %v91 = vpack.c.bf16 %v90, %v90
    %v92 = vld [vmem:[%s3] sm:$0xf]
    %v93 = vld [vmem:[%s3 + $0x4] sm:$0xf]
    %v94 = vld [vmem:[%s3 + $0x8] sm:$0xf]
    %v95 = vld [vmem:[%s3 + $0xc] sm:$0xf]
    %v96 = vld [vmem:[%s3 + $0x10] sm:$0xf]
    %v97 = vld [vmem:[%s3 + $0x14] sm:$0xf]
    %v98 = vld [vmem:[%s3 + $0x18] sm:$0xf]
    %v99 = vld [vmem:[%s3 + $0x1c] sm:$0xf]
    %v100 = vld [vmem:[%s3 + $0x20] sm:$0xf]
    %v101 = vld [vmem:[%s3 + $0x24] sm:$0xf]
    %v102 = vld [vmem:[%s3 + $0x28] sm:$0xf]
    %v103 = vld [vmem:[%s3 + $0x2c] sm:$0xf]
    %v104 = vld [vmem:[%s3 + $0x30] sm:$0xf]
    %v105 = vld [vmem:[%s3 + $0x34] sm:$0xf]
    %v106 = vld [vmem:[%s3 + $0x38] sm:$0xf]
    %v107 = vld [vmem:[%s3 + $0x3c] sm:$0xf]
    %v124 = vunpack.c.l.b16 %v92
    %v125 = vunpack.c.l.b16 %v93
    %v126 = vunpack.c.l.b16 %v94
    %v127 = vunpack.c.l.b16 %v95
    %v128 = vunpack.c.l.b16 %v96
    %v129 = vunpack.c.l.b16 %v97
    %v130 = vunpack.c.l.b16 %v98
    %v131 = vunpack.c.l.b16 %v99
    %v132 = vunpack.c.l.b16 %v100
    %v133 = vunpack.c.l.b16 %v101
    %v134 = vunpack.c.l.b16 %v102
    %v135 = vunpack.c.l.b16 %v103
    %v136 = vunpack.c.l.b16 %v104
    %v137 = vunpack.c.l.b16 %v105
    %v138 = vunpack.c.l.b16 %v106
    %v139 = vunpack.c.l.b16 %v107
    %v140 = vpack.c.b16 %v125, %v124
    %v141 = vpack.c.b16 %v127, %v126
    %v142 = vpack.c.b16 %v129, %v128
    %v143 = vpack.c.b16 %v131, %v130
    %v144 = vpack.c.b16 %v133, %v132
    %v145 = vpack.c.b16 %v135, %v134
    %v146 = vpack.c.b16 %v137, %v136
    %v147 = vpack.c.b16 %v139, %v138
    %156 = vmatprep.subr.bf16.mxu0 0
    %157 = vmatpush1.bf16.msra.mxu0 %v140
    %158 = vmatprep.subr.bf16.mxu0 0
    %159 = vmatpush1.bf16.msra.mxu0 %v141
    %160 = vmatprep.subr.bf16.mxu0 0
    %161 = vmatpush1.bf16.msra.mxu0 %v142
    %162 = vmatprep.subr.bf16.mxu0 0
    %163 = vmatpush1.bf16.msra.mxu0 %v143
    %164 = vmatprep.subr.bf16.mxu0 0
    %165 = vmatpush1.bf16.msra.mxu0 %v144
    %166 = vmatprep.subr.bf16.mxu0 0
    %167 = vmatpush1.bf16.msra.mxu0 %v145
    %168 = vmatprep.subr.bf16.mxu0 0
    %169 = vmatpush1.bf16.msra.mxu0 %v146
    %170 = vmatprep.subr.bf16.mxu0 0
    %171 = vmatpush1.bf16.msra.mxu0 %v147
    %172 = vmatprep.subr.bf16.mxu0 0
    %173 = vmatpush1.bf16.msra.mxu0 0
    %174 = vmatprep.subr.bf16.mxu0 0
    %175 = vmatpush1.bf16.msra.mxu0 0
    %176 = vmatprep.subr.bf16.mxu0 0
    %177 = vmatpush1.bf16.msra.mxu0 0
    %178 = vmatprep.subr.bf16.mxu0 0
    %179 = vmatpush1.bf16.msra.mxu0 0
    %180 = vmatprep.subr.bf16.mxu0 0
    %181 = vmatpush1.bf16.msra.mxu0 0
    %182 = vmatprep.subr.bf16.mxu0 0
    %183 = vmatpush1.bf16.msra.mxu0 0
    %184 = vmatprep.subr.bf16.mxu0 0
    %185 = vmatpush1.bf16.msra.mxu0 0
    %186 = vmatprep.subr.bf16.mxu0 0
    %187 = vmatpush1.bf16.msra.mxu0 0
    %188 = vmatprep.mubr.bf16.mxu0 0
    %189 = vmatmul.mubr.bf16.gmra.mrb[0].mxu0 %v91
    %v190 = vpop.f32.mrb[0].mxu0
    %v191 = vadd.f32 0.0, %v190
    %v192 = vpop.f32.mrb[0].mxu0
    %v193 = vpop.f32.mrb[0].mxu0
    %v194 = vpop.f32.mrb[0].mxu0
    %195 = vdwg.mxu0
    %v196 = vld [vmem:[%s4] sm:$0x1]
    %v198 = vlaneseq
    %v199 = vshrl.u32 %v198, 7
    %v200 = vsub.s32 0, %v199
    %v201 = vrot.slane %v196, %v200
    %v203 = vadd.f32 %v191, %v201
    %vm204 = vcmask 80896
    %205 = vst.msk [vmem:[#allocation2] sm:$0xff] %vm204, %v203
    // Predicated region
    $region22: #{mlp_classifier_forward.1} parent=1 // pred_check
      _
    $region23: #{mlp_classifier_forward.1} parent=1 // pred_check_branch
      %207 = sbr.rel (0) target = $region25
    $region24: #{mlp_classifier_forward.1} parent=1 // pred_region
      %s209 = ssub.s32 128, 128
      %210 = vsyncadd [#allocation3], %s209
      %s212 = sshll.u32 [#allocation2], 4
      %s213 = int_to_ptr.vmem [resolvable:$true] %s212
      %215 = dma.vmem_to_hbm [thread:$0]  %s213, 128, %s5, [#allocation3]
    $region25: #{mlp_classifier_forward.1} parent=1 // pred_fallthru
      _
    // Predicated region
    $region26: #{mlp_classifier_forward.1} parent=1 // pred_check
      _
    $region27: #{mlp_classifier_forward.1} parent=1 // pred_check_branch
      %217 = sbr.rel (0) target = $region29
    $region28: #{mlp_classifier_forward.1} parent=1 // pred_region
      %218 = dma.done [#allocation3], 128
    $region29: #{mlp_classifier_forward.1} parent=1 // pred_fallthru
      _
    %219 = vsyncpa [#allocation3], 1

</llo_original>
